<compile_context>
chip_gen: v7x
topology: tpu7x:2x2x1
jax: 0.10.0
libtpu: 0.0.40
codegen_flags: <defaults>
</compile_context>

<pallas_src>
import jax
import jax.numpy as jnp
from jax.experimental import pallas as pl
from jax.experimental.pallas import tpu as pltpu


def _round_up(x, m):
    return ((x + m - 1) // m) * m


def _qnet_kernel(x_ref, w1_ref, b1_ref, w2_ref, b2_ref, o_ref):
    # Layer 1: (TB, S) @ (S, H). Operands in the weights' dtype (bf16 by default,
    # single MXU pass); accumulate in f32.
    x = x_ref[...].astype(w1_ref.dtype)
    h = jnp.dot(x, w1_ref[...], preferred_element_type=jnp.float32)
    # Bias + ReLU epilogue in f32 on the VPU (v5e has no bf16 VPU).
    h = jnp.maximum(h + b1_ref[...], 0.0)
    # Layer 2: (TB, H) @ (H, A). A is the true action count (narrow is fine: only the
    # useful output bytes are ever written back to HBM).
    out = jnp.dot(h.astype(w2_ref.dtype), w2_ref[...],
                  preferred_element_type=jnp.float32)
    o_ref[...] = (out + b2_ref[...]).astype(o_ref.dtype)


def prepare_params(w1, b1, w2, b2, *, param_dtype=jnp.bfloat16):
    """One-time parameter prep (hoisted out of the per-call hot path).

    Weights are stored (in_features, out_features) so the kernel computes x @ W + b,
    numerically equivalent to PyTorch's x @ W.T + b. Weights default to bf16 (halved
    resident/streamed bytes, MXU-native); biases stay f32 for the f32 epilogue.
    """
    return (jnp.asarray(w1, param_dtype),
            jnp.asarray(b1, jnp.float32).reshape(1, -1),
            jnp.asarray(w2, param_dtype),
            jnp.asarray(b2, jnp.float32).reshape(1, -1))


def naive_qnet_forward(states, params, *, block_b=2048, small_batch_max=1024):
    """states: (B, state_dim); params from prepare_params; returns (B, n_action) f32."""
    w1, b1, w2, b2 = params
    B, S = states.shape
    H = w1.shape[1]
    A = w2.shape[1]

    if B <= small_batch_max:
        # Tiny-batch RL inference path: whole problem is one VMEM block, no grid,
        # no padding, no slicing.
        return pl.pallas_call(
            _qnet_kernel,
            out_shape=jax.ShapeDtypeStruct((B, A), jnp.float32),
            in_specs=[pl.BlockSpec(memory_space=pltpu.MemorySpace.VMEM)] * 5,
            out_specs=pl.BlockSpec(memory_space=pltpu.MemorySpace.VMEM),
        )(states, w1, b1, w2, b2)

    # Large-batch path: tile the batch; Pallas double-buffers state/output DMAs,
    # weights stay VMEM-resident, and the ragged tail block is masked in-kernel
    # (rows are independent, so garbage OOB reads are harmless and OOB writes dropped).
    tb = block_b
    if pl.cdiv(B, tb) < 2:
        # Keep >= 2 (even) grid blocks so the "parallel" batch axis can shard across
        # v7x's two TensorCores instead of serializing onto one.
        tb = _round_up(pl.cdiv(B, 2), 8)
    num_blocks = pl.cdiv(B, tb)

    return pl.pallas_call(
        _qnet_kernel,
        out_shape=jax.ShapeDtypeStruct((B, A), jnp.float32),
        grid=(num_blocks,),
        in_specs=[
            pl.BlockSpec((tb, S), lambda i: (i, 0)),   # states: streamed per block
            pl.BlockSpec((S, H), lambda i: (0, 0)),    # w1: VMEM-resident
            pl.BlockSpec((1, H), lambda i: (0, 0)),    # b1: VMEM-resident
            pl.BlockSpec((H, A), lambda i: (0, 0)),    # w2: VMEM-resident
            pl.BlockSpec((1, A), lambda i: (0, 0)),    # b2: VMEM-resident
        ],
        out_specs=pl.BlockSpec((tb, A), lambda i: (i, 0)),
        compiler_params=pltpu.CompilerParams(
            dimension_semantics=("parallel",),  # batch blocks independent (megacore)
        ),
    )(states, w1, b1, w2, b2)


def init_params(key, state_dim, n_action, hidden=128):
    k1, k2, k3, k4 = jax.random.split(key, 4)
    # Deterministic synthetic init (uniform, roughly matching torch Linear scale).
    lim1 = 1.0 / jnp.sqrt(state_dim)
    lim2 = 1.0 / jnp.sqrt(hidden)
    w1 = jax.random.uniform(k1, (state_dim, hidden), jnp.float32, -lim1, lim1)
    b1 = jax.random.uniform(k2, (hidden,), jnp.float32, -lim1, lim1)
    w2 = jax.random.uniform(k3, (hidden, n_action), jnp.float32, -lim2, lim2)
    b2 = jax.random.uniform(k4, (n_action,), jnp.float32, -lim2, lim2)
    return w1, b1, w2, b2


if __name__ == "__main__":
    key = jax.random.PRNGKey(0)
    kx, kp, kx2, kx3 = jax.random.split(key, 4)

    state_dim, n_action, batch = 4, 6, 2
    states = jax.random.normal(kx, (batch, state_dim), jnp.float32)
    w1, b1, w2, b2 = init_params(kp, state_dim, n_action)

    def ref_f32(x):
        return jnp.maximum(x @ w1 + b1, 0.0) @ w2 + b2

    def ref_prepared(x, params):
        # Same dtype choices as the kernel (bf16-cast operands, f32 accumulate/epilogue).
        w1p, b1p, w2p, b2p = params
        xf = x.astype(w1p.dtype).astype(jnp.float32)
        h = jnp.maximum(xf @ w1p.astype(jnp.float32) + b1p, 0.0)
        return h.astype(w2p.dtype).astype(jnp.float32) @ w2p.astype(jnp.float32) + b2p

    # 1) Exact-f32 params, tiny-batch (no-grid) path: matches PyTorch-style f32 math.
    params_f32 = prepare_params(w1, b1, w2, b2, param_dtype=jnp.float32)
    out = jax.block_until_ready(naive_qnet_forward(states, params_f32))
    assert out.shape == (batch, n_action)
    assert jnp.allclose(out, ref_f32(states), atol=1e-5, rtol=1e-5)

    # 2) Default bf16-weight params, tiny-batch path.
    params = prepare_params(w1, b1, w2, b2)
    out_bf = jax.block_until_ready(naive_qnet_forward(states, params))
    assert jnp.allclose(out_bf, ref_prepared(states, params), atol=1e-3, rtol=1e-3)
    assert jnp.allclose(out_bf, ref_f32(states), atol=5e-2, rtol=5e-2)

    # 3) Large-batch tiled path with a ragged tail (4100 = 2*2048 + 4): edge block is
    #    masked in-kernel, no wrapper-side pad/slice passes.
    big_b = 4100
    big_states = jax.random.normal(kx2, (big_b, state_dim), jnp.float32)
    big_out = jax.block_until_ready(
        naive_qnet_forward(big_states, params, block_b=2048))
    assert big_out.shape == (big_b, n_action)
    assert jnp.allclose(big_out, ref_prepared(big_states, params), atol=1e-3, rtol=1e-3)

    # 4) Batch larger than small_batch_max but smaller than block_b: tile is split so
    #    the grid keeps 2 blocks (keeps both v7x TensorCores busy).
    mid_b = 1500
    mid_states = jax.random.normal(kx3, (mid_b, state_dim), jnp.float32)
    mid_out = jax.block_until_ready(
        naive_qnet_forward(mid_states, params, block_b=2048))
    assert mid_out.shape == (mid_b, n_action)
    assert jnp.allclose(mid_out, ref_prepared(mid_states, params), atol=1e-3, rtol=1e-3)

    print("KERNEL_OK")
</pallas_src>

<mosaic_0001>
module attributes {stable_mosaic.version = 11 : i64} {
  func.func @_qnet_kernel(%arg0: memref<2x4xf32, #tpu.memory_space<vmem>>, %arg1: memref<4x128xf32, #tpu.memory_space<vmem>>, %arg2: memref<1x128xf32, #tpu.memory_space<vmem>>, %arg3: memref<128x6xf32, #tpu.memory_space<vmem>>, %arg4: memref<1x6xf32, #tpu.memory_space<vmem>>, %arg5: memref<2x6xf32, #tpu.memory_space<vmem>>) attributes {dimension_semantics = [], scalar_prefetch = 0 : i64, scratch_operands = 0 : i64, tpu.core_type = #tpu.core_type<tc>} {
    %c0 = arith.constant 0 : index
    %c0_0 = arith.constant 0 : index
    %0 = vector.load %arg0[%c0, %c0_0] : memref<2x4xf32, #tpu.memory_space<vmem>>, vector<2x4xf32>
    %c0_1 = arith.constant 0 : index
    %c0_2 = arith.constant 0 : index
    %1 = vector.load %arg1[%c0_1, %c0_2] : memref<4x128xf32, #tpu.memory_space<vmem>>, vector<4x128xf32>
    %cst = arith.constant dense<0.000000e+00> : vector<2x128xf32>
    %2 = tpu.matmul %0, %1, %cst {dimension_numbers = #tpu.dot_dimension_numbers<[1], [0], [0], [1], [0, 0, 1, 1], [], []>} : vector<2x4xf32>, vector<4x128xf32>, vector<2x128xf32> -> vector<2x128xf32>
    %c0_3 = arith.constant 0 : index
    %c0_4 = arith.constant 0 : index
    %3 = vector.load %arg2[%c0_3, %c0_4] : memref<1x128xf32, #tpu.memory_space<vmem>>, vector<1x128xf32>
    %4 = vector.broadcast %3 : vector<1x128xf32> to vector<2x128xf32>
    %5 = arith.addf %2, %4 : vector<2x128xf32>
    %cst_5 = arith.constant 0.000000e+00 : f32
    %6 = vector.broadcast %cst_5 : f32 to vector<2x128xf32>
    %7 = arith.maximumf %5, %6 : vector<2x128xf32>
    %c0_6 = arith.constant 0 : index
    %c0_7 = arith.constant 0 : index
    %8 = vector.load %arg3[%c0_6, %c0_7] : memref<128x6xf32, #tpu.memory_space<vmem>>, vector<128x6xf32>
    %cst_8 = arith.constant dense<0.000000e+00> : vector<2x6xf32>
    %9 = tpu.matmul %7, %8, %cst_8 {dimension_numbers = #tpu.dot_dimension_numbers<[1], [0], [0], [1], [0, 0, 1, 1], [], []>} : vector<2x128xf32>, vector<128x6xf32>, vector<2x6xf32> -> vector<2x6xf32>
    %c0_9 = arith.constant 0 : index
    %c0_10 = arith.constant 0 : index
    %10 = vector.load %arg4[%c0_9, %c0_10] : memref<1x6xf32, #tpu.memory_space<vmem>>, vector<1x6xf32>
    %11 = vector.broadcast %10 : vector<1x6xf32> to vector<2x6xf32>
    %12 = arith.addf %9, %11 : vector<2x6xf32>
    %c0_11 = arith.constant 0 : index
    %c0_12 = arith.constant 0 : index
    %13 = vector.load %arg5[%c0_11, %c0_12] : memref<2x6xf32, #tpu.memory_space<vmem>>, vector<2x6xf32>
    tpu.vector_store %arg5[%c0_11, %c0_12], %12 {strides = array<i32>} : memref<2x6xf32, #tpu.memory_space<vmem>>, vector<2x6xf32>,
    return
  }
}

</mosaic_0001>

<llo_original>
// kernel: tpu_custom_call.1
$region0: #{tpu_custom_call.1}
  #allocation0 [shape = 'u32[]', space=smem, size = 0x4, offset = 0x4, fixed_abs, tag = 'smem constant byte address 0x4 - core index']
  #allocation1 [shape = 'u32[144,128]{1,0:T(1,128)}', space=vmem, size = 0x12000, scoped, tag = 'internal scratch']
  %s0 = inlined_call_operand.vmem [shape: f32[2,4], index: 0, kind: input, shape index: {}]
  %s1 = inlined_call_operand.vmem [shape: f32[4,128], index: 1, kind: input, shape index: {}]
  %s2 = inlined_call_operand.vmem [shape: f32[1,128], index: 2, kind: input, shape index: {}]
  %s3 = inlined_call_operand.vmem [shape: f32[128,6], index: 3, kind: input, shape index: {}]
  %s4 = inlined_call_operand.vmem [shape: f32[1,6], index: 4, kind: input, shape index: {}]
  %s5 = inlined_call_operand.hbm [shape: f32[2,6], index: 5, kind: output, shape index: {}]
  %s6 = sld [smem:[#allocation0]]
  $region30: #{tpu_custom_call.1} parent=0
    _
  %s8 = ssub.s32 1, %s6
  %s9 = scalar_select 0, %s8, %s6
  $region1: #{tpu_custom_call.1} parent=0
    #allocation2 [shape = 'u8[1024]{0}', space=vmem, size = 0x400, scoped, tag = 'output window, operand 0, single buffered']
    #allocation3 [shape = 's32[1]{0}', space=sflag, size = 0x4, scoped, tag = 'scoped memory for tpu_custom_call.1']
    %10 = vsyncpa [#allocation3], 0
    // Predicated region
    $region2: #{tpu_custom_call.1} parent=1 // pred_check
      _
    $region3: #{tpu_custom_call.1} parent=1 // pred_check_branch
      %12 = sbr.rel (0) target = $region5
    $region4: #{tpu_custom_call.1} parent=1 // pred_region
      _
    $region5: #{tpu_custom_call.1} parent=1 // pred_fallthru
      _
    // Predicated region
    $region6: #{tpu_custom_call.1} parent=1 // pred_check
      _
    $region7: #{tpu_custom_call.1} parent=1 // pred_check_branch
      %14 = sbr.rel (0) target = $region9
    $region8: #{tpu_custom_call.1} parent=1 // pred_region
      _
    $region9: #{tpu_custom_call.1} parent=1 // pred_fallthru
      _
    // Predicated region
    $region10: #{tpu_custom_call.1} parent=1 // pred_check
      _
    $region11: #{tpu_custom_call.1} parent=1 // pred_check_branch
      %16 = sbr.rel (0) target = $region13
    $region12: #{tpu_custom_call.1} parent=1 // pred_region
      _
    $region13: #{tpu_custom_call.1} parent=1 // pred_fallthru
      _
    // Predicated region
    $region14: #{tpu_custom_call.1} parent=1 // pred_check
      _
    $region15: #{tpu_custom_call.1} parent=1 // pred_check_branch
      %18 = sbr.rel (0) target = $region17
    $region16: #{tpu_custom_call.1} parent=1 // pred_region
      _
    $region17: #{tpu_custom_call.1} parent=1 // pred_fallthru
      _
    // Predicated region
    $region18: #{tpu_custom_call.1} parent=1 // pred_check
      _
    $region19: #{tpu_custom_call.1} parent=1 // pred_check_branch
      %20 = sbr.rel (0) target = $region21
    $region20: #{tpu_custom_call.1} parent=1 // pred_region
      _
    $region21: #{tpu_custom_call.1} parent=1 // pred_fallthru
      _
    %v21 = vld [vmem:[%s0] sm:$0x3]
    %v22 = vld [vmem:[%s1] sm:$0xf]
    %v23 = vld [vmem:[%s2] sm:$0x1]
    %v25 = vlaneseq
    %v26 = vshrl.u32 %v25, 7
    %v27 = vsub.s32 0, %v26
    %v28 = vrot.slane %v23, %v27
    %vm30 = vcmask 31744
    %v32 = vsel %vm30, %v21, 0
    %vm34 = vcmask 1043456
    %v36 = vsel %vm34, %v22, 0
    %38 = vmatprep.subr.mxu0 0.0
    %39 = vmatpush1.msra.mxu0 %v36
    %40 = vmatprep.subr.mxu0 0.0
    %41 = vmatpush1.msra.mxu0 0.0
    %42 = vmatprep.subr.mxu0 0.0
    %43 = vmatpush1.msra.mxu0 0.0
    %44 = vmatprep.subr.mxu0 0.0
    %45 = vmatpush1.msra.mxu0 0.0
    %46 = vmatprep.subr.mxu0 0.0
    %47 = vmatpush1.msra.mxu0 0.0
    %48 = vmatprep.subr.mxu0 0.0
    %49 = vmatpush1.msra.mxu0 0.0
    %50 = vmatprep.subr.mxu0 0.0
    %51 = vmatpush1.msra.mxu0 0.0
    %52 = vmatprep.subr.mxu0 0.0
    %53 = vmatpush1.msra.mxu0 0.0
    %54 = vmatprep.subr.mxu0 0.0
    %55 = vmatpush1.msra.mxu0 0.0
    %56 = vmatprep.subr.mxu0 0.0
    %57 = vmatpush1.msra.mxu0 0.0
    %58 = vmatprep.subr.mxu0 0.0
    %59 = vmatpush1.msra.mxu0 0.0
    %60 = vmatprep.subr.mxu0 0.0
    %61 = vmatpush1.msra.mxu0 0.0
    %62 = vmatprep.subr.mxu0 0.0
    %63 = vmatpush1.msra.mxu0 0.0
    %64 = vmatprep.subr.mxu0 0.0
    %65 = vmatpush1.msra.mxu0 0.0
    %66 = vmatprep.subr.mxu0 0.0
    %67 = vmatpush1.msra.mxu0 0.0
    %68 = vmatprep.subr.mxu0 0.0
    %69 = vmatpush1.msra.mxu0 0.0
    %70 = vmatprep.subr.mxu0 0.0
    %71 = vmatpush1.msra.mxu0 0.0
    %72 = vmatprep.subr.mxu0 0.0
    %73 = vmatpush1.msra.mxu0 0.0
    %74 = vmatprep.subr.mxu0 0.0
    %75 = vmatpush1.msra.mxu0 0.0
    %76 = vmatprep.subr.mxu0 0.0
    %77 = vmatpush1.msra.mxu0 0.0
    %78 = vmatprep.subr.mxu0 0.0
    %79 = vmatpush1.msra.mxu0 0.0
    %80 = vmatprep.subr.mxu0 0.0
    %81 = vmatpush1.msra.mxu0 0.0
    %82 = vmatprep.subr.mxu0 0.0
    %83 = vmatpush1.msra.mxu0 0.0
    %84 = vmatprep.subr.mxu0 0.0
    %85 = vmatpush1.msra.mxu0 0.0
    %86 = vmatprep.subr.mxu0 0.0
    %87 = vmatpush1.msra.mxu0 0.0
    %88 = vmatprep.subr.mxu0 0.0
    %89 = vmatpush1.msra.mxu0 0.0
    %90 = vmatprep.subr.mxu0 0.0
    %91 = vmatpush1.msra.mxu0 0.0
    %92 = vmatprep.subr.mxu0 0.0
    %93 = vmatpush1.msra.mxu0 0.0
    %94 = vmatprep.subr.mxu0 0.0
    %95 = vmatpush1.msra.mxu0 0.0
    %96 = vmatprep.subr.mxu0 0.0
    %97 = vmatpush1.msra.mxu0 0.0
    %98 = vmatprep.subr.mxu0 0.0
    %99 = vmatpush1.msra.mxu0 0.0
    %100 = vmatprep.subr.mxu0 0.0
    %101 = vmatpush1.msra.mxu0 0.0
    %102 = vmatprep.mubr.f32.mxu0 0.0
    %103 = vmatmul.mubr.f32.gmra.mrb[0].mxu0 %v32
    %v104 = vpop.f32.mrb[0].mxu0
    %v105 = vadd.f32 %v28, %v104
    %v106 = vpop.f32.mrb[0].mxu0
    %107 = vdwg.mxu0
    %v108 = vmax.f32 %v105, 0.0
    %v109 = vld [vmem:[%s3] sm:$0xff]
    %v110 = vld [vmem:[%s3 + $0x8] sm:$0xff]
    %v111 = vld [vmem:[%s3 + $0x10] sm:$0xff]
    %v112 = vld [vmem:[%s3 + $0x18] sm:$0xff]
    %v113 = vld [vmem:[%s3 + $0x20] sm:$0xff]
    %v114 = vld [vmem:[%s3 + $0x28] sm:$0xff]
    %v115 = vld [vmem:[%s3 + $0x30] sm:$0xff]
    %v116 = vld [vmem:[%s3 + $0x38] sm:$0xff]
    %v117 = vld [vmem:[%s3 + $0x40] sm:$0xff]
    %v118 = vld [vmem:[%s3 + $0x48] sm:$0xff]
    %v119 = vld [vmem:[%s3 + $0x50] sm:$0xff]
    %v120 = vld [vmem:[%s3 + $0x58] sm:$0xff]
    %v121 = vld [vmem:[%s3 + $0x60] sm:$0xff]
    %v122 = vld [vmem:[%s3 + $0x68] sm:$0xff]
    %v123 = vld [vmem:[%s3 + $0x70] sm:$0xff]
    %v124 = vld [vmem:[%s3 + $0x78] sm:$0xff]
    %v125 = vld [vmem:[%s4] sm:$0x1]
    %v127 = vlaneseq
    %v128 = vshrl.u32 %v127, 7
    %v129 = vsub.s32 0, %v128
    %v130 = vrot.slane %v125, %v129
    %132 = vmatprep.subr.mxu0 0.0
    %133 = vmatpush1.msra.mxu0 %v109
    %134 = vmatprep.subr.mxu0 0.0
    %135 = vmatpush1.msra.mxu0 %v110
    %136 = vmatprep.subr.mxu0 0.0
    %137 = vmatpush1.msra.mxu0 %v111
    %138 = vmatprep.subr.mxu0 0.0
    %139 = vmatpush1.msra.mxu0 %v112
    %140 = vmatprep.subr.mxu0 0.0
    %141 = vmatpush1.msra.mxu0 %v113
    %142 = vmatprep.subr.mxu0 0.0
    %143 = vmatpush1.msra.mxu0 %v114
    %144 = vmatprep.subr.mxu0 0.0
    %145 = vmatpush1.msra.mxu0 %v115
    %146 = vmatprep.subr.mxu0 0.0
    %147 = vmatpush1.msra.mxu0 %v116
    %148 = vmatprep.subr.mxu0 0.0
    %149 = vmatpush1.msra.mxu0 %v117
    %150 = vmatprep.subr.mxu0 0.0
    %151 = vmatpush1.msra.mxu0 %v118
    %152 = vmatprep.subr.mxu0 0.0
    %153 = vmatpush1.msra.mxu0 %v119
    %154 = vmatprep.subr.mxu0 0.0
    %155 = vmatpush1.msra.mxu0 %v120
    %156 = vmatprep.subr.mxu0 0.0
    %157 = vmatpush1.msra.mxu0 %v121
    %158 = vmatprep.subr.mxu0 0.0
    %159 = vmatpush1.msra.mxu0 %v122
    %160 = vmatprep.subr.mxu0 0.0
    %161 = vmatpush1.msra.mxu0 %v123
    %162 = vmatprep.subr.mxu0 0.0
    %163 = vmatpush1.msra.mxu0 %v124
    %164 = vmatprep.subr.mxu0 0.0
    %165 = vmatpush1.msra.mxu0 0.0
    %166 = vmatprep.subr.mxu0 0.0
    %167 = vmatpush1.msra.mxu0 0.0
    %168 = vmatprep.subr.mxu0 0.0
    %169 = vmatpush1.msra.mxu0 0.0
    %170 = vmatprep.subr.mxu0 0.0
    %171 = vmatpush1.msra.mxu0 0.0
    %172 = vmatprep.subr.mxu0 0.0
    %173 = vmatpush1.msra.mxu0 0.0
    %174 = vmatprep.subr.mxu0 0.0
    %175 = vmatpush1.msra.mxu0 0.0
    %176 = vmatprep.subr.mxu0 0.0
    %177 = vmatpush1.msra.mxu0 0.0
    %178 = vmatprep.subr.mxu0 0.0
    %179 = vmatpush1.msra.mxu0 0.0
    %180 = vmatprep.subr.mxu0 0.0
    %181 = vmatpush1.msra.mxu0 0.0
    %182 = vmatprep.subr.mxu0 0.0
    %183 = vmatpush1.msra.mxu0 0.0
    %184 = vmatprep.subr.mxu0 0.0
    %185 = vmatpush1.msra.mxu0 0.0
    %186 = vmatprep.subr.mxu0 0.0
    %187 = vmatpush1.msra.mxu0 0.0
    %188 = vmatprep.subr.mxu0 0.0
    %189 = vmatpush1.msra.mxu0 0.0
    %190 = vmatprep.subr.mxu0 0.0
    %191 = vmatpush1.msra.mxu0 0.0
    %192 = vmatprep.subr.mxu0 0.0
    %193 = vmatpush1.msra.mxu0 0.0
    %194 = vmatprep.subr.mxu0 0.0
    %195 = vmatpush1.msra.mxu0 0.0
    %196 = vmatprep.mubr.f32.mxu0 0.0
    %197 = vmatmul.mubr.f32.gmra.mrb[0].mxu0 %v108
    %v198 = vpop.f32.mrb[0].mxu0
    %v199 = vadd.f32 %v130, %v198
    %v200 = vpop.f32.mrb[0].mxu0
    %201 = vdwg.mxu0
    %vm202 = vcmask 41984
    %203 = vst.msk [vmem:[#allocation2] sm:$0x3] %vm202, %v199
    // Predicated region
    $region22: #{tpu_custom_call.1} parent=1 // pred_check
      _
    $region23: #{tpu_custom_call.1} parent=1 // pred_check_branch
      %205 = sbr.rel (0) target = $region25
    $region24: #{tpu_custom_call.1} parent=1 // pred_region
      %s207 = ssub.s32 32, 32
      %208 = vsyncadd [#allocation3], %s207
      %s210 = sshll.u32 [#allocation2], 4
      %s211 = int_to_ptr.vmem [resolvable:$true] %s210
      %213 = dma.vmem_to_hbm [thread:$0]  %s211, 32, %s5, [#allocation3]
    $region25: #{tpu_custom_call.1} parent=1 // pred_fallthru
      _
    // Predicated region
    $region26: #{tpu_custom_call.1} parent=1 // pred_check
      _
    $region27: #{tpu_custom_call.1} parent=1 // pred_check_branch
      %215 = sbr.rel (0) target = $region29
    $region28: #{tpu_custom_call.1} parent=1 // pred_region
      %216 = dma.done [#allocation3], 32
    $region29: #{tpu_custom_call.1} parent=1 // pred_fallthru
      _
    %217 = vsyncpa [#allocation3], 1

</llo_original>
